<compile_context>
chip_gen: v6e
topology: v6e:2x2x1
jax: 0.10.0
libtpu: 0.0.40
codegen_flags: <defaults>
</compile_context>

<pallas_src>
import functools

import jax
import jax.numpy as jnp
from jax.experimental import pallas as pl
from jax.experimental.pallas import tpu as pltpu

_EPS = 1e-6        # F.pairwise_distance default eps (added to the difference)
_CHUNK_CAP = 1024  # max rows of f32 temporaries live at once inside the kernel


def _round_up(x, m):
    return (x + m - 1) // m * m


def _tpu_params():
    """(num_core_splits, vmem_limit_bytes) — generation aware, with safe fallbacks."""
    capacity = None
    try:
        capacity = getattr(pltpu.get_tpu_info(), "vmem_capacity_bytes", None)
    except Exception:
        capacity = None
    kind = ""
    try:
        kind = jax.devices()[0].device_kind.lower()
    except Exception:
        kind = ""
    is_v7 = ("v7" in kind) or ("7x" in kind)
    if capacity is None:
        if is_v7:
            capacity = 64 * 1024 * 1024
        elif any(t in kind for t in ("v4", "v5", "v6")):
            capacity = 128 * 1024 * 1024
        else:
            capacity = 64 * 1024 * 1024           # conservative default
    nc = 2 if is_v7 else 1                        # only v7x has 2 TensorCores/chip
    vmem_limit = int(min(capacity // 2, 64 * 1024 * 1024))
    return nc, vmem_limit


def _choose_tb(B, D, itemsize, vmem_limit, nc):
    """Rows per streamed tile, sized from an explicit VMEM budget.

    VMEM cost model (last dim lane-pads to 128 in VMEM):
      streamed, double-buffered (per row): 2 inputs * 2 bufs * lane_D * itemsize
                                           + label: 2 bufs * 128 * 4
      in-kernel f32 temporaries: bounded by the <= _CHUNK_CAP-row chunk loop.
    """
    g = 8 * max(1, 4 // max(1, itemsize))         # sublane granularity (16 for bf16)
    lane_d = _round_up(D, 128)
    per_row = 2 * 2 * lane_d * itemsize + 2 * 128 * 4
    chunk_rows = min(_CHUNK_CAP, _round_up(B, g))
    chunk_bytes = chunk_rows * (3 * lane_d * 4 + 6 * 128 * 4)
    budget = int(vmem_limit * 0.75) - chunk_bytes - 64 * 1024
    budget = max(budget, per_row * g)
    tb = budget // per_row
    tb = min(tb, _round_up(-(-B // nc), g))       # never bigger than the per-core batch
    tb = max(g, (tb // g) * g)
    if tb > _CHUNK_CAP:
        tb = (tb // _CHUNK_CAP) * _CHUNK_CAP      # keep TB a multiple of the chunk size
    return int(tb)


def _contrastive_loss_kernel(o1_ref, o2_ref, lab_ref, out_ref, acc_ref, *,
                             B, TB, CHUNK, nb_per_core, margin):
    # o1_ref, o2_ref: (TB, D) native dtype; lab_ref: (TB, 1) f32
    # out_ref: (8, 128) f32 partial-sum block (one per core); acc_ref: (8, 128) f32 scratch
    c = pl.program_id(0)   # core-split axis ("parallel")
    i = pl.program_id(1)   # batch-tile axis ("arbitrary": carries the accumulator)

    @pl.when(i == 0)
    def _init():
        acc_ref[...] = jnp.zeros_like(acc_ref)

    raw_blk = c * nb_per_core + i          # unclamped tile index (for masking)
    tile_row0 = raw_blk * TB

    def do_chunk(start):
        o1 = o1_ref[pl.ds(start, CHUNK), :].astype(jnp.float32)
        o2 = o2_ref[pl.ds(start, CHUNK), :].astype(jnp.float32)
        lab = lab_ref[pl.ds(start, CHUNK), :].astype(jnp.float32)

        diff = o1 - o2 + _EPS                                  # matches pairwise_distance eps
        d2 = jnp.sum(diff * diff, axis=-1, keepdims=True)      # (CHUNK, 1) squared distance
        d = jnp.sqrt(d2)
        hinge = jnp.maximum(margin - d, 0.0)
        per_sample = (1.0 - lab) * d2 + lab * (hinge * hinge)  # reuse d2 for similar term

        row = tile_row0 + start + jax.lax.broadcasted_iota(jnp.int32, (CHUNK, 1), 0)
        per_sample = jnp.where(row < B, per_sample, 0.0)       # select (not multiply) kills garbage
        acc_ref[...] += jnp.sum(per_sample)                    # scalar splat-add into accumulator

    n_chunks = TB // CHUNK
    if n_chunks == 1:
        do_chunk(0)
    else:
        @pl.loop(0, n_chunks)
        def _chunks(cc):
            do_chunk(pl.multiple_of(cc * CHUNK, CHUNK))

    @pl.when(i == nb_per_core - 1)
    def _finalize():
        out_ref[...] = acc_ref[...]


def contrastive_loss(output1, output2, label, margin=2.0, tb=None):
    B, D = output1.shape
    lab = label.astype(jnp.float32).reshape(B, 1)

    nc, vmem_limit = _tpu_params()
    itemsize = output1.dtype.itemsize
    TB = tb if tb is not None else _choose_tb(B, D, itemsize, vmem_limit, nc)
    assert TB % 8 == 0, "tile rows must be a multiple of 8"
    CHUNK = TB if TB <= _CHUNK_CAP else _CHUNK_CAP
    assert TB % CHUNK == 0

    nb_total = -(-B // TB)                 # number of real batch tiles
    nb_per_core = -(-nb_total // nc)       # tiles handled per core

    def in_map(c, i):
        # Clamp padded grid steps to an in-bounds block; their rows are masked in-kernel.
        return (jnp.minimum(c * nb_per_core + i, nb_total - 1), 0)

    kernel = functools.partial(
        _contrastive_loss_kernel,
        B=B, TB=TB, CHUNK=CHUNK, nb_per_core=nb_per_core, margin=float(margin),
    )

    cost = pl.CostEstimate(
        flops=int(B * (3 * D + 10)),
        transcendentals=int(B),
        bytes_accessed=int(2 * B * D * itemsize + B * 4 + nc * 8 * 128 * 4),
    )

    partial_out = pl.pallas_call(
        kernel,
        grid=(nc, nb_per_core),
        in_specs=[
            pl.BlockSpec((TB, D), in_map),
            pl.BlockSpec((TB, D), in_map),
            pl.BlockSpec((TB, 1), in_map),
        ],
        out_specs=pl.BlockSpec((8, 128), lambda c, i: (c, 0)),
        out_shape=jax.ShapeDtypeStruct((nc * 8, 128), jnp.float32),
        scratch_shapes=[pltpu.VMEM((8, 128), jnp.float32)],
        compiler_params=pltpu.CompilerParams(
            dimension_semantics=("parallel", "arbitrary"),
            vmem_limit_bytes=vmem_limit,
        ),
        cost_estimate=cost,
    )(output1, output2, lab)

    # One partial sum per core (every element of its (8,128) block holds the same value).
    partials = partial_out[::8, 0]
    return jnp.sum(partials) / B


def _reference(output1, output2, label, margin=2.0):
    o1 = output1.astype(jnp.float32)
    o2 = output2.astype(jnp.float32)
    lab = label.astype(jnp.float32)
    d = jnp.sqrt(jnp.sum((o1 - o2 + _EPS) ** 2, axis=-1))
    return jnp.mean((1.0 - lab) * d**2 + lab * jnp.maximum(margin - d, 0.0) ** 2)


if __name__ == "__main__":
    key = jax.random.PRNGKey(0)
    k1, k2, k3, k4, k5, k6 = jax.random.split(key, 6)

    # Primary small-shape check (f32).
    B, D = 8, 32
    output1 = jax.random.normal(k1, (B, D), dtype=jnp.float32)
    output2 = jax.random.normal(k2, (B, D), dtype=jnp.float32)
    label = jax.random.bernoulli(k3, 0.5, (B,)).astype(jnp.float32)

    loss = jax.block_until_ready(contrastive_loss(output1, output2, label))
    ref = _reference(output1, output2, label)
    assert jnp.allclose(loss, ref, rtol=1e-5, atol=1e-5), (loss, ref)

    # Secondary check: bf16 inputs, ragged batch, multiple tiles per core (exercises
    # the grid accumulator, in-kernel upcast, row mask, and index clamping).
    B2, D2 = 300, 48
    o1b = jax.random.normal(k4, (B2, D2), dtype=jnp.bfloat16)
    o2b = jax.random.normal(k5, (B2, D2), dtype=jnp.bfloat16)
    labb = jax.random.bernoulli(k6, 0.5, (B2,)).astype(jnp.float32)

    loss2 = jax.block_until_ready(contrastive_loss(o1b, o2b, labb, tb=64))
    ref2 = _reference(o1b, o2b, labb)
    assert jnp.allclose(loss2, ref2, rtol=1e-5, atol=1e-5), (loss2, ref2)

    print("KERNEL_OK")
</pallas_src>

<mosaic_0001>
module attributes {stable_mosaic.version = 11 : i64} {
  func.func @_contrastive_loss_kernel(%arg0: i32, %arg1: i32, %arg2: memref<8x32xf32, #tpu.memory_space<vmem>>, %arg3: memref<8x32xf32, #tpu.memory_space<vmem>>, %arg4: memref<8x1xf32, #tpu.memory_space<vmem>>, %arg5: memref<8x128xf32, #tpu.memory_space<vmem>>, %arg6: memref<8x128xf32, #tpu.memory_space<vmem>>) attributes {dimension_semantics = [#tpu.dimension_semantics<parallel>, #tpu.dimension_semantics<arbitrary>], iteration_bounds = array<i64: 1, 1>, scalar_prefetch = 0 : i64, scratch_operands = 1 : i64, tpu.core_type = #tpu.core_type<tc>, window_params = [{transform_indices = @transform_0, window_bounds = array<i64: 8, 32>}, {transform_indices = @transform_1, window_bounds = array<i64: 8, 32>}, {transform_indices = @transform_2, window_bounds = array<i64: 8, 1>}, {transform_indices = @transform_3, window_bounds = array<i64: 8, 128>}]} {
    %c0_i32 = arith.constant 0 : i32
    %0 = arith.cmpi eq, %arg1, %c0_i32 : i32
    %1 = arith.extui %0 : i1 to i32
    %c0_i32_0 = arith.constant 0 : i32
    %2 = arith.cmpi ne, %1, %c0_i32_0 : i32
    scf.if %2 {
      %cst_20 = arith.constant 0.000000e+00 : f32
      %45 = vector.broadcast %cst_20 : f32 to vector<8x128xf32>
      %c0_21 = arith.constant 0 : index
      %c0_22 = arith.constant 0 : index
      %46 = vector.load %arg6[%c0_21, %c0_22] : memref<8x128xf32, #tpu.memory_space<vmem>>, vector<8x128xf32>
      tpu.vector_store %arg6[%c0_21, %c0_22], %45 {strides = array<i32>} : memref<8x128xf32, #tpu.memory_space<vmem>>, vector<8x128xf32>,
    } else {
    }
    %c1_i32 = arith.constant 1 : i32
    %3 = arith.muli %arg0, %c1_i32 : i32
    %4 = arith.addi %3, %arg1 : i32
    %c8_i32 = arith.constant 8 : i32
    %5 = arith.muli %4, %c8_i32 : i32
    %c0 = arith.constant 0 : index
    %c0_1 = arith.constant 0 : index
    %6 = vector.load %arg2[%c0, %c0_1] : memref<8x32xf32, #tpu.memory_space<vmem>>, vector<8x32xf32>
    %c0_2 = arith.constant 0 : index
    %c0_3 = arith.constant 0 : index
    %7 = vector.load %arg3[%c0_2, %c0_3] : memref<8x32xf32, #tpu.memory_space<vmem>>, vector<8x32xf32>
    %c0_4 = arith.constant 0 : index
    %c0_5 = arith.constant 0 : index
    %8 = vector.load %arg4[%c0_4, %c0_5] : memref<8x1xf32, #tpu.memory_space<vmem>>, vector<8x1xf32>
    %9 = arith.subf %6, %7 : vector<8x32xf32>
    %cst = arith.constant 9.99999997E-7 : f32
    %10 = vector.broadcast %cst : f32 to vector<8x32xf32>
    %11 = arith.addf %9, %10 : vector<8x32xf32>
    %12 = arith.mulf %11, %11 : vector<8x32xf32>
    %cst_6 = arith.constant dense<0.000000e+00> : vector<8xf32>
    %13 = vector.multi_reduction <add>, %12, %cst_6 [1] : vector<8x32xf32> to vector<8xf32>
    %14 = vector.shape_cast %13 : vector<8xf32> to vector<8x1xf32>
    %15 = math.sqrt %14 : vector<8x1xf32>
    %cst_7 = arith.constant 2.000000e+00 : f32
    %16 = vector.broadcast %cst_7 : f32 to vector<8x1xf32>
    %17 = arith.subf %16, %15 : vector<8x1xf32>
    %cst_8 = arith.constant 0.000000e+00 : f32
    %18 = vector.broadcast %cst_8 : f32 to vector<8x1xf32>
    %19 = arith.maximumf %17, %18 : vector<8x1xf32>
    %cst_9 = arith.constant 1.000000e+00 : f32
    %20 = vector.broadcast %cst_9 : f32 to vector<8x1xf32>
    %21 = arith.subf %20, %8 : vector<8x1xf32>
    %22 = arith.mulf %21, %14 : vector<8x1xf32>
    %23 = arith.mulf %19, %19 : vector<8x1xf32>
    %24 = arith.mulf %8, %23 : vector<8x1xf32>
    %25 = arith.addf %22, %24 : vector<8x1xf32>
    %c0_i32_10 = arith.constant 0 : i32
    %26 = arith.addi %5, %c0_i32_10 : i32
    %27 = tpu.iota {dimensions = array<i32: 0>} : vector<8x1xi32>
    %28 = vector.broadcast %26 : i32 to vector<8x1xi32>
    %29 = arith.addi %28, %27 : vector<8x1xi32>
    %c8_i32_11 = arith.constant 8 : i32
    %30 = vector.broadcast %c8_i32_11 : i32 to vector<8x1xi32>
    %31 = arith.cmpi slt, %29, %30 : vector<8x1xi32>
    %cst_12 = arith.constant 0.000000e+00 : f32
    %32 = vector.broadcast %cst_12 : f32 to vector<8x1xf32>
    %33 = arith.select %31, %25, %32 : vector<8x1xi1>, vector<8x1xf32>
    %c0_13 = arith.constant 0 : index
    %c0_14 = arith.constant 0 : index
    %34 = vector.load %arg6[%c0_13, %c0_14] : memref<8x128xf32, #tpu.memory_space<vmem>>, vector<8x128xf32>
    %35 = vector.shape_cast %33 : vector<8x1xf32> to vector<1x8x1xf32>
    %cst_15 = arith.constant dense<0.000000e+00> : vector<1xf32>
    %36 = vector.multi_reduction <add>, %35, %cst_15 [1, 2] : vector<1x8x1xf32> to vector<1xf32>
    %37 = vector.shape_cast %36 : vector<1xf32> to vector<1x1x1xf32>
    %38 = vector.extract %37[0, 0, 0] : f32 from vector<1x1x1xf32>
    %39 = vector.broadcast %38 : f32 to vector<8x128xf32>
    %40 = arith.addf %34, %39 : vector<8x128xf32>
    %c0_16 = arith.constant 0 : index
    %c0_17 = arith.constant 0 : index
    %41 = vector.load %arg6[%c0_16, %c0_17] : memref<8x128xf32, #tpu.memory_space<vmem>>, vector<8x128xf32>
    tpu.vector_store %arg6[%c0_16, %c0_17], %40 {strides = array<i32>} : memref<8x128xf32, #tpu.memory_space<vmem>>, vector<8x128xf32>,
    %c0_i32_18 = arith.constant 0 : i32
    %42 = arith.cmpi eq, %arg1, %c0_i32_18 : i32
    %43 = arith.extui %42 : i1 to i32
    %c0_i32_19 = arith.constant 0 : i32
    %44 = arith.cmpi ne, %43, %c0_i32_19 : i32
    scf.if %44 {
      %c0_20 = arith.constant 0 : index
      %c0_21 = arith.constant 0 : index
      %45 = vector.load %arg6[%c0_20, %c0_21] : memref<8x128xf32, #tpu.memory_space<vmem>>, vector<8x128xf32>
      %c0_22 = arith.constant 0 : index
      %c0_23 = arith.constant 0 : index
      %46 = vector.load %arg5[%c0_22, %c0_23] : memref<8x128xf32, #tpu.memory_space<vmem>>, vector<8x128xf32>
      tpu.vector_store %arg5[%c0_22, %c0_23], %45 {strides = array<i32>} : memref<8x128xf32, #tpu.memory_space<vmem>>, vector<8x128xf32>,
    } else {
    }
    return
  }
  func.func @transform_0(%arg0: i32, %arg1: i32) -> (i32, i32) {
    %c1_i32 = arith.constant 1 : i32
    %0 = arith.muli %arg0, %c1_i32 : i32
    %1 = arith.addi %0, %arg1 : i32
    %c0_i32 = arith.constant 0 : i32
    %2 = arith.minsi %1, %c0_i32 : i32
    %c0_i32_0 = arith.constant 0 : i32
    %c0_i32_1 = arith.constant 0 : i32
    return %2, %c0_i32_0 : i32, i32
  }
  func.func @transform_1(%arg0: i32, %arg1: i32) -> (i32, i32) {
    %c1_i32 = arith.constant 1 : i32
    %0 = arith.muli %arg0, %c1_i32 : i32
    %1 = arith.addi %0, %arg1 : i32
    %c0_i32 = arith.constant 0 : i32
    %2 = arith.minsi %1, %c0_i32 : i32
    %c0_i32_0 = arith.constant 0 : i32
    %c0_i32_1 = arith.constant 0 : i32
    return %2, %c0_i32_0 : i32, i32
  }
  func.func @transform_2(%arg0: i32, %arg1: i32) -> (i32, i32) {
    %c1_i32 = arith.constant 1 : i32
    %0 = arith.muli %arg0, %c1_i32 : i32
    %1 = arith.addi %0, %arg1 : i32
    %c0_i32 = arith.constant 0 : i32
    %2 = arith.minsi %1, %c0_i32 : i32
    %c0_i32_0 = arith.constant 0 : i32
    %c0_i32_1 = arith.constant 0 : i32
    return %2, %c0_i32_0 : i32, i32
  }
  func.func @transform_3(%arg0: i32, %arg1: i32) -> (i32, i32) {
    %c0_i32 = arith.constant 0 : i32
    %c0_i32_0 = arith.constant 0 : i32
    return %arg0, %c0_i32 : i32, i32
  }
}

</mosaic_0001>

<llo_original>
// kernel: tpu_custom_call.1
$region0: #{tpu_custom_call.1}
  #allocation0 [shape = 'u32[]', space=smem, size = 0x4, offset = 0x4, fixed_abs, tag = 'smem constant byte address 0x4 - core index']
  #allocation1 [shape = 'u32[144,128]{1,0:T(1,128)}', space=vmem, size = 0x12000, scoped, tag = 'internal scratch']
  #allocation2 [shape = 'f32[8,128]{1,0:T(8,128)}', space=vmem, size = 0x1000, scoped, tag = 'scratch operand']
  %s0 = inlined_call_operand.vmem [shape: f32[8,32], index: 0, kind: input, shape index: {}]
  %s1 = inlined_call_operand.hbm [shape: f32[8,32], index: 1, kind: input, shape index: {}]
  %s2 = inlined_call_operand.vmem [shape: f32[8,1], index: 2, kind: input, shape index: {}]
  %s3 = inlined_call_operand.hbm [shape: f32[8,128], index: 3, kind: output, shape index: {}]
  %s4 = sld [smem:[#allocation0]]
  $region34: #{tpu_custom_call.1} parent=0
    _
  %s6 = ssub.s32 1, %s4
  %s7 = scalar_select 0, %s6, %s4
  $region1: #{tpu_custom_call.1} parent=0
    #allocation3 [shape = 'u8[4096]{0}', space=vmem, size = 0x1000, scoped, tag = 'input window, operand 1, single buffered']
    #allocation4 [shape = 's32[1]{0}', space=sflag, size = 0x4, scoped, tag = 'scoped memory for tpu_custom_call.1']
    #allocation5 [shape = 's32[1]{0}', space=sflag, size = 0x4, scoped, tag = 'scoped memory for tpu_custom_call.1']
    #allocation6 [shape = 'u8[4096]{0}', space=vmem, size = 0x1000, scoped, tag = 'output window, operand 0, single buffered']
    %8 = vsyncpa [#allocation4], 0
    %9 = vsyncpa [#allocation5], 0
    // Predicated region
    $region2: #{tpu_custom_call.1} parent=1 // pred_check
      _
    $region3: #{tpu_custom_call.1} parent=1 // pred_check_branch
      %11 = sbr.rel (0) target = $region5
    $region4: #{tpu_custom_call.1} parent=1 // pred_region
      %s12 = sadd.s32 0, 0
      %p13 = scmp.lt.s32.totalorder %s12, 0
      %s14 = scalar_select %p13, %s12, 0
      %p15 = scmp.lt.s32.totalorder %s14, 0
      %s16 = scalar_select %p15, %s14, 0
      %s17 = smul.addr %s16, 8
      %s18 = scalar_lea.vmem %s0, %s17
      %s19 = sadd.s32 0, 0
      %p20 = scmp.lt.s32.totalorder %s19, 0
      %s21 = scalar_select %p20, %s19, 0
    $region5: #{tpu_custom_call.1} parent=1 // pred_fallthru
      _
    // Predicated region
    $region6: #{tpu_custom_call.1} parent=1 // pred_check
      _
    $region7: #{tpu_custom_call.1} parent=1 // pred_check_branch
      %23 = sbr.rel (0) target = $region9
    $region8: #{tpu_custom_call.1} parent=1 // pred_region
      %s24 = sadd.s32 0, 0
      %p25 = scmp.lt.s32.totalorder %s24, 0
      %s26 = scalar_select %p25, %s24, 0
      %s28 = ssub.s32 128, 128
      %29 = vsyncadd [#allocation4], %s28
      %s30 = smul.addr %s26, 128
      %s31 = scalar_lea.hbm %s1, %s30
      %s33 = sshll.u32 [#allocation3], 4
      %s34 = int_to_ptr.vmem [resolvable:$true] %s33
      %36 = dma.hbm_to_vmem [thread:$0]  %s31, 128, %s34, [#allocation4]
    $region9: #{tpu_custom_call.1} parent=1 // pred_fallthru
      _
    // Predicated region
    $region10: #{tpu_custom_call.1} parent=1 // pred_check
      _
    $region11: #{tpu_custom_call.1} parent=1 // pred_check_branch
      %38 = sbr.rel (0) target = $region13
    $region12: #{tpu_custom_call.1} parent=1 // pred_region
      %s39 = sadd.s32 0, 0
      %p40 = scmp.lt.s32.totalorder %s39, 0
      %s41 = scalar_select %p40, %s39, 0
      %p42 = scmp.lt.s32.totalorder %s41, 0
      %s43 = scalar_select %p42, %s41, 0
      %s44 = smul.addr %s43, 8
      %s45 = scalar_lea.vmem %s2, %s44
      %s46 = sadd.s32 0, 0
      %p47 = scmp.lt.s32.totalorder %s46, 0
      %s48 = scalar_select %p47, %s46, 0
    $region13: #{tpu_custom_call.1} parent=1 // pred_fallthru
      _
    // Predicated region
    $region14: #{tpu_custom_call.1} parent=1 // pred_check
      _
    $region15: #{tpu_custom_call.1} parent=1 // pred_check_branch
      %50 = sbr.rel (0) target = $region17
    $region16: #{tpu_custom_call.1} parent=1 // pred_region
      %51 = dma.done [#allocation4], 128
    $region17: #{tpu_custom_call.1} parent=1 // pred_fallthru
      _
    %s52 = sadd.s32 0, 0
    %p53 = scmp.lt.s32.totalorder %s52, 0
    %s54 = scalar_select %p53, %s52, 0
    %p55 = scmp.lt.s32.totalorder %s54, 0
    %s56 = scalar_select %p55, %s54, 0
    %s57 = smul.addr %s56, 8
    %s58 = scalar_lea.vmem %s0, %s57
    %s59 = sadd.s32 0, 0
    %p60 = scmp.lt.s32.totalorder %s59, 0
    %s61 = scalar_select %p60, %s59, 0
    %p62 = scmp.lt.s32.totalorder %s61, 0
    %s63 = scalar_select %p62, %s61, 0
    %s64 = smul.addr %s63, 8
    %s65 = scalar_lea.vmem %s2, %s64
    %s66 = sadd.s32 0, 0
    %p67 = scmp.lt.s32.totalorder %s66, 0
    %s68 = scalar_select %p67, %s66, 0
    %p69 = scmp.lt.s32.totalorder %s68, 0
    %s70 = scalar_select %p69, %s68, 0
    %s71 = smul.addr %s70, 8
    %s72 = scalar_lea.vmem %s0, %s71
    %s73 = sadd.s32 0, 0
    %p74 = scmp.lt.s32.totalorder %s73, 0
    %s75 = scalar_select %p74, %s73, 0
    %s76 = sadd.s32 0, 0
    %p77 = scmp.lt.s32.totalorder %s76, 0
    %s78 = scalar_select %p77, %s76, 0
    %s79 = sadd.s32 0, 0
    %p80 = scmp.lt.s32.totalorder %s79, 0
    %s81 = scalar_select %p80, %s79, 0
    %p82 = scmp.lt.s32.totalorder %s81, 0
    %s83 = scalar_select %p82, %s81, 0
    %s84 = smul.addr %s83, 8
    %s85 = scalar_lea.vmem %s2, %s84
    %s86 = sadd.s32 0, 0
    %p87 = scmp.lt.s32.totalorder %s86, 0
    %s88 = scalar_select %p87, %s86, 0
    %p89 = scmp.eq.s32.totalorder 0, 0
    // Predicated region
    $region18: #{tpu_custom_call.1} parent=1 // pred_check
      %p90 = pneg %p89
    $region19: #{tpu_custom_call.1} parent=1 // pred_check_branch
      %92 = sbr.rel (%p90) target = $region21
    $region20: #{tpu_custom_call.1} parent=1 // pred_region
      %93 = vst [vmem:[#allocation2] sm:$0xff] 0.0
    $region21: #{tpu_custom_call.1} parent=1 // pred_fallthru
      _
    %s94 = sadd.s32 0, 0
    %s95 = smul.u32 %s94, 8
    %v96 = vld [vmem:[%s72] sm:$0xff]
    %v97 = vld [vmem:[#allocation3] sm:$0xff]
    %v98 = vld [vmem:[%s85] sm:$0xff]
    %v99 = vsub.f32 %v96, %v97
    %v100 = vadd.f32 %v99, 1e-06
    %v101 = vmul.f32 %v100, %v100
    %vm102 = vcmask 261120
    %v103 = vsel %vm102, %v101, 0.0
    %104 = vadd.xlane.f32.xlu0 %v103
    %v105 = vpop.xlane.xlu0 %104
    %v106 = vrsqrt.pop %v105
    %v107 = vmul.f32 %v105, %v106
    %vm108 = vcmp.eq.f32.partialorder %v105, inf
    %v109 = vsel %vm108, %v105, %v107
    %vm110 = vcmp.eq.f32.partialorder %v105, 0.0
    %v111 = vand.u32 %v105, 2147483648
    %v112 = vsel %vm110, %v111, %v109
    %v113 = vsub.f32 2.0, %v112
    %v114 = vmax.f32 %v113, 0.0
    %v115 = vsub.f32 1.0, %v98
    %v116 = vmul.f32 %v115, %v105
    %v117 = vmul.f32 %v114, %v114
    %v118 = vmul.f32 %v98, %v117
    %v119 = vadd.f32 %v116, %v118
    %v120 = vlaneseq
    %v121 = vshrl.u32 %v120, 7
    %v122 = vstv %s95
    %v123 = vadd.s32 %v122, %v121
    %vm124 = vcmp.lt.s32.totalorder %v123, 8
    %v125 = vsel %vm124, %v119, 0.0
    %v126 = vld [vmem:[#allocation2] sm:$0xff]
    %vm127 = vcmask 7168
    %v128 = vsel %vm127, %v125, 0.0
    %129 = vadd.xlane.f32.xlu0 %v128
    %v130 = vpop.xlane.xlu0 %129
    %v131 = vrot.slane %v130, 4
    %v132 = vadd.f32 %v130, %v131
    %v133 = vrot.slane %v132, 2
    %v134 = vadd.f32 %v132, %v133
    %v135 = vrot.slane %v134, 1
    %v136 = vadd.f32 %v134, %v135
    %s137 = vtos %v136
    %v138 = vstv %s137
    %v139 = vadd.f32 %v126, %v138
    %140 = vst [vmem:[#allocation2] sm:$0xff] %v139
    // Predicated region
    $region22: #{tpu_custom_call.1} parent=1 // pred_check
      %p141 = pneg %p89
    $region23: #{tpu_custom_call.1} parent=1 // pred_check_branch
      %143 = sbr.rel (%p141) target = $region25
    $region24: #{tpu_custom_call.1} parent=1 // pred_region
      %v144 = vld [vmem:[#allocation2] sm:$0xff]
      %145 = vst [vmem:[#allocation6] sm:$0xff] %v144
    $region25: #{tpu_custom_call.1} parent=1 // pred_fallthru
      _
    // Predicated region
    $region26: #{tpu_custom_call.1} parent=1 // pred_check
      _
    $region27: #{tpu_custom_call.1} parent=1 // pred_check_branch
      %147 = sbr.rel (0) target = $region29
    $region28: #{tpu_custom_call.1} parent=1 // pred_region
      %s149 = ssub.s32 128, 128
      %150 = vsyncadd [#allocation5], %s149
      %s152 = sshll.u32 [#allocation6], 4
      %s153 = int_to_ptr.vmem [resolvable:$true] %s152
      %155 = dma.vmem_to_hbm [thread:$0]  %s153, 128, %s3, [#allocation5]
    $region29: #{tpu_custom_call.1} parent=1 // pred_fallthru
      _
    // Predicated region
    $region30: #{tpu_custom_call.1} parent=1 // pred_check
      _
    $region31: #{tpu_custom_call.1} parent=1 // pred_check_branch
      %157 = sbr.rel (0) target = $region33
    $region32: #{tpu_custom_call.1} parent=1 // pred_region
      %158 = dma.done [#allocation5], 128
    $region33: #{tpu_custom_call.1} parent=1 // pred_fallthru
      _
    %159 = vsyncpa [#allocation4], 1
    %160 = vsyncpa [#allocation5], 1

</llo_original>
